<compile_context>
chip_gen: v6e
topology: v6e:2x2x1
jax: 0.10.0
libtpu: 0.0.40
codegen_flags: <defaults>
</compile_context>

<pallas_src>
import jax
import jax.numpy as jnp
from jax.experimental import pallas as pl
from jax.experimental.pallas import tpu as pltpu


# ---------------------------------------------------------------------------
# Kernel body
# ---------------------------------------------------------------------------
def _h_sigmoid_kernel(scale_ref, x_ref, o_ref):
    # scale_ref: (1,) f32 in SMEM (scalar prefetch), holds h_max / 6.
    x = x_ref[...].astype(jnp.float32)
    y = jnp.clip(x + 3.0, 0.0, 6.0) * scale_ref[0]
    o_ref[...] = y.astype(o_ref.dtype)


# ---------------------------------------------------------------------------
# Tiling helpers
# ---------------------------------------------------------------------------
_TARGET_BLOCK_BYTES = 2 * 1024 * 1024   # per block; 2 in + 2 out bufs ~ 8 MiB


def _sublane_packing(dtype):
    # f32 -> 8 sublanes, bf16/f16 -> 16, int8/fp8 -> 32.
    return max(8, 32 // jnp.dtype(dtype).itemsize)


def _choose_block_rows(rows, cols, itemsize, packing):
    total_bytes = rows * cols * itemsize
    if total_bytes <= _TARGET_BLOCK_BYTES or rows <= packing:
        # Single block covering the full row extent (allowed even if rows is
        # not a multiple of 8, since it equals the full array dim).
        return rows
    br = (_TARGET_BLOCK_BYTES // (cols * itemsize)) // packing * packing
    br = max(packing, br)
    # Keep a multiple of `packing` and <= rows; raggedness of the last grid
    # block is handled by Pallas (masked boundary stores).
    return min(br, max(packing, (rows // packing) * packing))


def _run_kernel_2d(x2d, scale, out_dtype, block_rows):
    rows, cols = x2d.shape
    grid = (pl.cdiv(rows, block_rows),)
    return pl.pallas_call(
        _h_sigmoid_kernel,
        out_shape=jax.ShapeDtypeStruct((rows, cols), out_dtype),
        grid_spec=pltpu.PrefetchScalarGridSpec(
            num_scalar_prefetch=1,
            grid=grid,
            in_specs=[pl.BlockSpec((block_rows, cols), lambda i, s: (i, 0))],
            out_specs=pl.BlockSpec((block_rows, cols), lambda i, s: (i, 0)),
        ),
        compiler_params=pltpu.CompilerParams(
            dimension_semantics=("parallel",)),
    )(scale, x2d)


# ---------------------------------------------------------------------------
# Public wrapper: NCHW (any shape) in -> same shape out
# ---------------------------------------------------------------------------
def h_sigmoid(x, h_max=1.0, *, lane_cols=None, min_kernel_elems=16384):
    """h_sigmoid(x) = relu6(x + 3) * h_max / 6, elementwise, any shape."""
    orig_shape = x.shape
    orig_dtype = x.dtype
    n = x.size

    # Tiny inputs: kernel dispatch + layout plumbing would dominate; let XLA
    # fuse the 4-op elementwise expression.
    if n == 0 or n < min_kernel_elems:
        y = jnp.clip(x.astype(jnp.float32) + 3.0, 0.0, 6.0) * (h_max / 6.0)
        return y.astype(orig_dtype)

    itemsize = jnp.dtype(orig_dtype).itemsize
    packing = _sublane_packing(orig_dtype)
    if lane_cols is None:
        lane_cols = 512 if itemsize >= 4 else 1024   # >=2 KiB per DMA row

    # h_max/6 as a traced SMEM scalar: no recompile per distinct h_max.
    scale = jnp.asarray([h_max / 6.0], dtype=jnp.float32)

    # ---- Aligned fast path: no pad, no tail slice (single read + write) ----
    if n % 128 == 0:
        cols = None
        for c in (lane_cols, lane_cols // 2, 256, 128):
            if c >= 128 and n % c == 0:
                cols = c
                break
        if cols is not None:
            rows = n // cols
            block_rows = _choose_block_rows(rows, cols, itemsize, packing)
            out2d = _run_kernel_2d(x.reshape(rows, cols), scale,
                                   orig_dtype, block_rows)
            return out2d.reshape(orig_shape)

    # ---- Ragged path: pad flat tail up to a (packing, lane_cols) slab ------
    cols = lane_cols
    rows = pl.cdiv(n, cols)
    rows_padded = max(packing, pl.cdiv(rows, packing) * packing)
    total = rows_padded * cols
    x_flat = jnp.ravel(x)
    if total != n:
        x_flat = jnp.pad(x_flat, (0, total - n))
    x2d = x_flat.reshape(rows_padded, cols)
    block_rows = _choose_block_rows(rows_padded, cols, itemsize, packing)
    out2d = _run_kernel_2d(x2d, scale, orig_dtype, block_rows)
    return out2d.reshape(-1)[:n].reshape(orig_shape)


def h_sigmoid_ref(x, h_max=1.0):
    y = jnp.clip(x.astype(jnp.float32) + 3.0, 0.0, 6.0) * (h_max / 6.0)
    return y.astype(x.dtype)


# ---------------------------------------------------------------------------
# Self-test
# ---------------------------------------------------------------------------
if __name__ == "__main__":
    key = jax.random.PRNGKey(0)

    # 1) Spec shape (NCHW, small) -> fused fast path.
    x_small = jax.random.normal(key, (2, 4, 16, 16), dtype=jnp.float32) * 4.0
    out_small = jax.block_until_ready(h_sigmoid(x_small, h_max=1.0))
    ref_small = h_sigmoid_ref(x_small, h_max=1.0)
    assert out_small.shape == x_small.shape and out_small.dtype == x_small.dtype
    assert jnp.allclose(out_small, ref_small, atol=1e-6, rtol=1e-6)

    # 2) Same small shape forced through the Pallas kernel (aligned, no pad).
    out_small_k = jax.block_until_ready(
        h_sigmoid(x_small, h_max=1.0, min_kernel_elems=0))
    assert jnp.allclose(out_small_k, ref_small, atol=1e-6, rtol=1e-6)

    # 3) Aligned medium NCHW shape, non-default h_max, f32 (kernel path).
    x_med = jax.random.normal(jax.random.fold_in(key, 1),
                              (2, 8, 32, 128), dtype=jnp.float32) * 4.0
    out_med = jax.block_until_ready(h_sigmoid(x_med, h_max=6.0))
    ref_med = h_sigmoid_ref(x_med, h_max=6.0)
    assert jnp.allclose(out_med, ref_med, atol=1e-6, rtol=1e-6)

    # 4) Ragged shape (x.size not a multiple of 128) -> padded kernel path.
    x_rag = jax.random.normal(jax.random.fold_in(key, 2),
                              (3, 5, 37, 53), dtype=jnp.float32) * 4.0
    out_rag = jax.block_until_ready(h_sigmoid(x_rag, h_max=1.0))
    ref_rag = h_sigmoid_ref(x_rag, h_max=1.0)
    assert out_rag.shape == x_rag.shape
    assert jnp.allclose(out_rag, ref_rag, atol=1e-6, rtol=1e-6)

    # 5) bf16 input (sub-32-bit packing path, f32 internal math).
    x_bf = (jax.random.normal(jax.random.fold_in(key, 3),
                              (2, 8, 64, 64), dtype=jnp.float32) * 4.0
            ).astype(jnp.bfloat16)
    out_bf = jax.block_until_ready(h_sigmoid(x_bf, h_max=1.0))
    ref_bf = h_sigmoid_ref(x_bf, h_max=1.0)
    assert out_bf.dtype == jnp.bfloat16
    assert jnp.allclose(out_bf.astype(jnp.float32),
                        ref_bf.astype(jnp.float32), atol=1e-2, rtol=1e-2)

    print("KERNEL_OK")
</pallas_src>

<mosaic_0001>
module attributes {stable_mosaic.version = 11 : i64} {
  func.func @_h_sigmoid_kernel(%arg0: i32, %arg1: memref<1xf32, #tpu.memory_space<smem>>, %arg2: memref<4x512xf32, #tpu.memory_space<vmem>>, %arg3: memref<4x512xf32, #tpu.memory_space<vmem>>) attributes {dimension_semantics = [#tpu.dimension_semantics<parallel>], iteration_bounds = array<i64: 1>, scalar_prefetch = 1 : i64, scratch_operands = 0 : i64, tpu.core_type = #tpu.core_type<tc>, window_params = [{transform_indices = @transform_0, window_bounds = array<i64: 4, 512>}, {transform_indices = @transform_1, window_bounds = array<i64: 4, 512>}]} {
    %c0 = arith.constant 0 : index
    %c0_0 = arith.constant 0 : index
    %0 = vector.load %arg2[%c0, %c0_0] : memref<4x512xf32, #tpu.memory_space<vmem>>, vector<4x512xf32>
    %cst = arith.constant 3.000000e+00 : f32
    %1 = vector.broadcast %cst : f32 to vector<4x512xf32>
    %2 = arith.addf %0, %1 : vector<4x512xf32>
    %cst_1 = arith.constant 0.000000e+00 : f32
    %cst_2 = arith.constant 6.000000e+00 : f32
    %3 = vector.broadcast %cst_1 : f32 to vector<4x512xf32>
    %4 = arith.maximumf %3, %2 : vector<4x512xf32>
    %5 = vector.broadcast %cst_2 : f32 to vector<4x512xf32>
    %6 = arith.minimumf %5, %4 : vector<4x512xf32>
    %c0_3 = arith.constant 0 : index
    %7 = memref.load %arg1[%c0_3] : memref<1xf32, #tpu.memory_space<smem>>
    %8 = vector.broadcast %7 : f32 to vector<4x512xf32>
    %9 = arith.mulf %6, %8 : vector<4x512xf32>
    %c0_4 = arith.constant 0 : index
    %c0_5 = arith.constant 0 : index
    %10 = vector.load %arg3[%c0_4, %c0_5] : memref<4x512xf32, #tpu.memory_space<vmem>>, vector<4x512xf32>
    tpu.vector_store %arg3[%c0_4, %c0_5], %9 {strides = array<i32>} : memref<4x512xf32, #tpu.memory_space<vmem>>, vector<4x512xf32>,
    return
  }
  func.func @transform_0(%arg0: i32, %arg1: memref<1xf32, #tpu.memory_space<smem>>) -> (i32, i32) {
    %c0_i32 = arith.constant 0 : i32
    %c0_i32_0 = arith.constant 0 : i32
    return %arg0, %c0_i32 : i32, i32
  }
  func.func @transform_1(%arg0: i32, %arg1: memref<1xf32, #tpu.memory_space<smem>>) -> (i32, i32) {
    %c0_i32 = arith.constant 0 : i32
    %c0_i32_0 = arith.constant 0 : i32
    return %arg0, %c0_i32 : i32, i32
  }
}

</mosaic_0001>

<llo_original>
// kernel: tpu_custom_call.1
$region0: #{tpu_custom_call.1}
  #allocation0 [shape = 'u32[]', space=smem, size = 0x4, offset = 0x4, fixed_abs, tag = 'smem constant byte address 0x4 - core index']
  #allocation1 [shape = 'u32[144,128]{1,0:T(1,128)}', space=vmem, size = 0x12000, scoped, tag = 'internal scratch']
  #allocation2 [shape = 's32[1]{0}', space=sflag, size = 0x4, scoped, tag = 'scoped memory for tpu_custom_call.1']
  #allocation3 [shape = 'f32[1]{0:T(128)S(6)}', space=smem, size = 0x200, scoped, tag = 'prefetched SMEM operand 0']
  %s0 = inlined_call_operand.<no memory space> [shape: f32[1], index: 0, kind: input, shape index: {}]
  %s1 = inlined_call_operand.hbm [shape: f32[4,512], index: 1, kind: input, shape index: {}]
  %s2 = inlined_call_operand.hbm [shape: f32[4,512], index: 2, kind: output, shape index: {}]
  %s3 = sld [smem:[#allocation0]]
  $region18: #{tpu_custom_call.1} parent=0
    _
  %s5 = ssub.s32 1, %s3
  %s6 = scalar_select 0, %s5, %s3
  %7 = sst [smem:[#allocation3]] %s0
  $region1: #{tpu_custom_call.1} parent=0
    #allocation4 [shape = 'u8[8192]{0}', space=vmem, size = 0x2000, scoped, tag = 'input window, operand 1, single buffered']
    #allocation5 [shape = 's32[1]{0}', space=sflag, size = 0x4, scoped, tag = 'scoped memory for tpu_custom_call.1']
    #allocation6 [shape = 's32[1]{0}', space=sflag, size = 0x4, scoped, tag = 'scoped memory for tpu_custom_call.1']
    #allocation7 [shape = 'u8[8192]{0}', space=vmem, size = 0x2000, scoped, tag = 'output window, operand 0, single buffered']
    %8 = vsyncpa [#allocation5], 0
    %9 = vsyncpa [#allocation6], 0
    // Predicated region
    $region2: #{tpu_custom_call.1} parent=1 // pred_check
      _
    $region3: #{tpu_custom_call.1} parent=1 // pred_check_branch
      %11 = sbr.rel (0) target = $region5
    $region4: #{tpu_custom_call.1} parent=1 // pred_region
      %s13 = ssub.s32 256, 256
      %14 = vsyncadd [#allocation5], %s13
      %s16 = sshll.u32 [#allocation4], 4
      %s17 = int_to_ptr.vmem [resolvable:$true] %s16
      %19 = dma.hbm_to_vmem [thread:$0]  %s1, 256, %s17, [#allocation5]
    $region5: #{tpu_custom_call.1} parent=1 // pred_fallthru
      _
    // Predicated region
    $region6: #{tpu_custom_call.1} parent=1 // pred_check
      _
    $region7: #{tpu_custom_call.1} parent=1 // pred_check_branch
      %21 = sbr.rel (0) target = $region9
    $region8: #{tpu_custom_call.1} parent=1 // pred_region
      %22 = dma.done [#allocation5], 256
    $region9: #{tpu_custom_call.1} parent=1 // pred_fallthru
      _
    %v23 = vld [vmem:[#allocation4] sm:$0xff]
    %v24 = vld [vmem:[#allocation4 + $0x8] sm:$0xff]
    %v25 = vadd.f32 %v23, 3.0
    %v26 = vadd.f32 %v24, 3.0
    %v27 = vmax.f32 %v25, 0.0
    %v28 = vmax.f32 %v26, 0.0
    %v29 = vmin.f32 %v27, 6.0
    %v30 = vmin.f32 %v28, 6.0
    %s31 = sld [smem:[#allocation3]]
    %v32 = vstv %s31
    %v33 = vmul.f32 %v29, %v32
    %v34 = vmul.f32 %v30, %v32
    %35 = vst [vmem:[#allocation7] sm:$0xff] %v33
    %36 = vst [vmem:[#allocation7 + $0x8] sm:$0xff] %v34
    // Predicated region
    $region10: #{tpu_custom_call.1} parent=1 // pred_check
      _
    $region11: #{tpu_custom_call.1} parent=1 // pred_check_branch
      %38 = sbr.rel (0) target = $region13
    $region12: #{tpu_custom_call.1} parent=1 // pred_region
      %s40 = ssub.s32 256, 256
      %41 = vsyncadd [#allocation6], %s40
      %s43 = sshll.u32 [#allocation7], 4
      %s44 = int_to_ptr.vmem [resolvable:$true] %s43
      %46 = dma.vmem_to_hbm [thread:$0]  %s44, 256, %s2, [#allocation6]
    $region13: #{tpu_custom_call.1} parent=1 // pred_fallthru
      _
    // Predicated region
    $region14: #{tpu_custom_call.1} parent=1 // pred_check
      _
    $region15: #{tpu_custom_call.1} parent=1 // pred_check_branch
      %48 = sbr.rel (0) target = $region17
    $region16: #{tpu_custom_call.1} parent=1 // pred_region
      %49 = dma.done [#allocation6], 256
    $region17: #{tpu_custom_call.1} parent=1 // pred_fallthru
      _
    %50 = vsyncpa [#allocation5], 1
    %51 = vsyncpa [#allocation6], 1

</llo_original>
